<compile_context>
chip_gen: v7x
topology: tpu7x:2x2x1
jax: 0.10.0
libtpu: 0.0.40
codegen_flags: <defaults>
</compile_context>

<pallas_src>
import jax
import jax.numpy as jnp
from jax.experimental import pallas as pl
from jax.experimental.pallas import tpu as pltpu

DENSE = 32          # the global `dense` hidden width used by the PyTorch module
IN_FEATURES = 7
OUT_FEATURES = 1
NEG_SLOPE = 0.01    # torch.nn.functional.leaky_relu default


def _leaky_relu(x):
    # identical to leaky_relu for slope < 1; one vmul+vmax, no compare+select
    return jnp.maximum(x, NEG_SLOPE * x)


def _round_up(n, m):
    return ((n + m - 1) // m) * m


def _in_pad(dtype):
    # native sublane tile: 8 rows for 32-bit dtypes, 16 for bf16 / other
    # sub-32-bit dtypes (packed along sublanes) -> avoids half-packed vregs.
    return 16 if jnp.dtype(dtype).itemsize < 4 else 8


def mlp_kernel(x_ref,
               w1_ref,
               w2_ref, b2_ref,
               w3_ref, b3_ref,
               w4_ref, b4_ref,
               o_ref):
    """Fused 4-layer MLP forward, batch-in-lanes: h = W @ h_prev (+ b)."""
    cdt = w1_ref.dtype                      # compute dtype (bf16 or f32)
    x = x_ref[...]                          # [IN_PAD, block_b]; row 7 is ones

    # lay1 (bias folded into w1 column IN_FEATURES via the ones row of x)
    h = jnp.dot(w1_ref[...], x, preferred_element_type=jnp.float32)
    h = h.astype(cdt)

    # lay2 + leaky_relu
    h = jnp.dot(w2_ref[...], h, preferred_element_type=jnp.float32) + b2_ref[...]
    h = _leaky_relu(h).astype(cdt)

    # lay3 + leaky_relu
    h = jnp.dot(w3_ref[...], h, preferred_element_type=jnp.float32) + b3_ref[...]
    h = _leaky_relu(h).astype(cdt)

    # lay4 + tanh
    h = jnp.dot(w4_ref[...], h, preferred_element_type=jnp.float32) + b4_ref[...]
    o_ref[...] = jnp.tanh(h).astype(o_ref.dtype)


def _choose_tiling(B, block_b, target_block_b):
    """Pick (block_b, n_steps, B_pad): big tiles, >=2 grid steps when possible,
    batch padded only to ~multiple of 128 (not of block_b)."""
    B_128 = _round_up(max(B, 1), 128)
    if block_b is None:
        n_steps = max(1, pl.cdiv(B_128, target_block_b))
        if n_steps == 1 and B_128 >= 256:
            n_steps = 2                 # v7x: shard across both TensorCores
        block_b = _round_up(pl.cdiv(B_128, n_steps), 128)
    assert block_b % 128 == 0, "block_b must be a multiple of 128 (lane width)"
    n_steps = pl.cdiv(B_128, block_b)
    B_pad = n_steps * block_b           # waste < n_steps*128 columns
    return block_b, n_steps, B_pad


def mlp_forward(x, params, *, block_b=None, compute_dtype=jnp.bfloat16,
                target_block_b=16384):
    """x: [B, 7] float32 (PyTorch layout).
    params: PyTorch-layout weights ([out, in]) and biases ([out])."""
    B = x.shape[0]
    assert x.shape[1] == IN_FEATURES

    block_b, n_steps, B_pad = _choose_tiling(B, block_b, target_block_b)
    in_pad = _in_pad(compute_dtype)

    # ---- batch-in-lanes relayout (wrapper-side layout plumbing only) ----
    x_t = jnp.zeros((in_pad, B_pad), compute_dtype)
    x_t = x_t.at[:IN_FEATURES, :B].set(x.T.astype(compute_dtype))
    # ones row for the folded layer-1 bias
    x_t = x_t.at[IN_FEATURES, :B].set(jnp.ones((B,), compute_dtype))

    # Weights stay in PyTorch [out, in] layout so the kernel computes W @ h.
    w1 = jnp.zeros((DENSE, in_pad), compute_dtype)
    w1 = w1.at[:, :IN_FEATURES].set(params["w1"].astype(compute_dtype))
    w1 = w1.at[:, IN_FEATURES].set(params["b1"].astype(compute_dtype))  # folded b1
    w2 = params["w2"].astype(compute_dtype)
    w3 = params["w3"].astype(compute_dtype)
    w4 = params["w4"].astype(compute_dtype).reshape(OUT_FEATURES, DENSE)
    # Remaining biases in f32 as [out, 1] columns (broadcast over batch lanes).
    b2 = params["b2"].astype(jnp.float32).reshape(DENSE, 1)
    b3 = params["b3"].astype(jnp.float32).reshape(DENSE, 1)
    b4 = params["b4"].astype(jnp.float32).reshape(OUT_FEATURES, 1)

    def resident(arr):
        shape = arr.shape
        # tiny grid-invariant operands: same full block every step
        return pl.BlockSpec(shape, lambda i, _s=shape: (0,) * len(_s))

    out_t = pl.pallas_call(
        mlp_kernel,
        out_shape=jax.ShapeDtypeStruct((OUT_FEATURES, B_pad), jnp.float32),
        grid_spec=pltpu.PrefetchScalarGridSpec(
            num_scalar_prefetch=0,
            grid=(n_steps,),
            in_specs=[
                pl.BlockSpec((in_pad, block_b), lambda i: (0, i)),   # x tile
                resident(w1),
                resident(w2), resident(b2),
                resident(w3), resident(b3),
                resident(w4), resident(b4),
            ],
            out_specs=pl.BlockSpec((OUT_FEATURES, block_b), lambda i: (0, i)),
        ),
        compiler_params=pltpu.CompilerParams(
            dimension_semantics=("parallel",)),
    )(x_t, w1, w2, b2, w3, b3, w4, b4)

    # back to PyTorch layout [B, 1]
    return out_t[0, :B].reshape(B, OUT_FEATURES)


def init_params(key, dense=DENSE):
    """PyTorch nn.Linear default init (U(-1/sqrt(fan_in), +)), PyTorch layout."""
    def linear(k, fan_in, fan_out):
        kw, kb = jax.random.split(k)
        bound = 1.0 / jnp.sqrt(fan_in)
        w = jax.random.uniform(kw, (fan_out, fan_in), jnp.float32, -bound, bound)
        b = jax.random.uniform(kb, (fan_out,), jnp.float32, -bound, bound)
        return w, b

    k1, k2, k3, k4 = jax.random.split(key, 4)
    w1, b1 = linear(k1, IN_FEATURES, dense)
    w2, b2 = linear(k2, dense, dense)
    w3, b3 = linear(k3, dense, dense)
    w4, b4 = linear(k4, dense, OUT_FEATURES)
    return {"w1": w1, "b1": b1, "w2": w2, "b2": b2,
            "w3": w3, "b3": b3, "w4": w4, "b4": b4}


def reference_forward(x, params):
    """Pure-JAX (fp32) reference of the PyTorch forward."""
    h = x @ params["w1"].T + params["b1"]
    h = jax.nn.leaky_relu(h @ params["w2"].T + params["b2"], NEG_SLOPE)
    h = jax.nn.leaky_relu(h @ params["w3"].T + params["b3"], NEG_SLOPE)
    return jnp.tanh(h @ params["w4"].T + params["b4"])


if __name__ == "__main__":
    key = jax.random.PRNGKey(0)
    kx, kp = jax.random.split(key)

    B = 512                      # small demo batch; auto tiling -> block_b=256, grid=(2,)
    x = jax.random.normal(kx, (B, IN_FEATURES), jnp.float32)
    params = init_params(kp)

    ref = reference_forward(x, params)

    # fp32 path: validates the transposed (batch-in-lanes) fused forward exactly,
    # including the folded layer-1 bias.
    out_f32 = jax.block_until_ready(
        mlp_forward(x, params, compute_dtype=jnp.float32))
    assert out_f32.shape == (B, OUT_FEATURES)
    assert jnp.allclose(out_f32, ref, atol=1e-4, rtol=1e-4), "fp32 mismatch vs reference"

    # bf16 path: the performance configuration (bf16 MXU inputs, f32 accumulation,
    # 16-row padded input, folded bf16 layer-1 bias).
    out_bf16 = jax.block_until_ready(
        mlp_forward(x, params, compute_dtype=jnp.bfloat16))
    assert out_bf16.shape == (B, OUT_FEATURES)
    assert jnp.allclose(out_bf16, ref, atol=3e-2), "bf16 mismatch vs reference"

    print("KERNEL_OK")
</pallas_src>

<mosaic_0001>
module attributes {stable_mosaic.version = 11 : i64} {
  func.func @mlp_kernel(%arg0: i32, %arg1: memref<8x256xf32, #tpu.memory_space<vmem>>, %arg2: memref<32x8xf32, #tpu.memory_space<vmem>>, %arg3: memref<32x32xf32, #tpu.memory_space<vmem>>, %arg4: memref<32x1xf32, #tpu.memory_space<vmem>>, %arg5: memref<32x32xf32, #tpu.memory_space<vmem>>, %arg6: memref<32x1xf32, #tpu.memory_space<vmem>>, %arg7: memref<1x32xf32, #tpu.memory_space<vmem>>, %arg8: memref<1x1xf32, #tpu.memory_space<vmem>>, %arg9: memref<1x256xf32, #tpu.memory_space<vmem>>) attributes {dimension_semantics = [#tpu.dimension_semantics<parallel>], iteration_bounds = array<i64: 2>, scalar_prefetch = 0 : i64, scratch_operands = 0 : i64, tpu.core_type = #tpu.core_type<tc>, window_params = [{transform_indices = @transform_0, window_bounds = array<i64: 8, 256>}, {pipeline_mode = #tpu.pipeline_mode<synchronous>, transform_indices = @transform_1, window_bounds = array<i64: 32, 8>}, {pipeline_mode = #tpu.pipeline_mode<synchronous>, transform_indices = @transform_2, window_bounds = array<i64: 32, 32>}, {pipeline_mode = #tpu.pipeline_mode<synchronous>, transform_indices = @transform_3, window_bounds = array<i64: 32, 1>}, {pipeline_mode = #tpu.pipeline_mode<synchronous>, transform_indices = @transform_4, window_bounds = array<i64: 32, 32>}, {pipeline_mode = #tpu.pipeline_mode<synchronous>, transform_indices = @transform_5, window_bounds = array<i64: 32, 1>}, {pipeline_mode = #tpu.pipeline_mode<synchronous>, transform_indices = @transform_6, window_bounds = array<i64: 1, 32>}, {pipeline_mode = #tpu.pipeline_mode<synchronous>, transform_indices = @transform_7, window_bounds = array<i64: 1, 1>}, {transform_indices = @transform_8, window_bounds = array<i64: 1, 256>}]} {
    %c0 = arith.constant 0 : index
    %c0_0 = arith.constant 0 : index
    %0 = vector.load %arg1[%c0, %c0_0] : memref<8x256xf32, #tpu.memory_space<vmem>>, vector<8x256xf32>
    %c0_1 = arith.constant 0 : index
    %c0_2 = arith.constant 0 : index
    %1 = vector.load %arg2[%c0_1, %c0_2] : memref<32x8xf32, #tpu.memory_space<vmem>>, vector<32x8xf32>
    %cst = arith.constant dense<0.000000e+00> : vector<32x256xf32>
    %2 = tpu.matmul %1, %0, %cst {dimension_numbers = #tpu.dot_dimension_numbers<[1], [0], [0], [1], [0, 0, 1, 1], [], []>} : vector<32x8xf32>, vector<8x256xf32>, vector<32x256xf32> -> vector<32x256xf32>
    %c0_3 = arith.constant 0 : index
    %c0_4 = arith.constant 0 : index
    %3 = vector.load %arg3[%c0_3, %c0_4] : memref<32x32xf32, #tpu.memory_space<vmem>>, vector<32x32xf32>
    %cst_5 = arith.constant dense<0.000000e+00> : vector<32x256xf32>
    %4 = tpu.matmul %3, %2, %cst_5 {dimension_numbers = #tpu.dot_dimension_numbers<[1], [0], [0], [1], [0, 0, 1, 1], [], []>} : vector<32x32xf32>, vector<32x256xf32>, vector<32x256xf32> -> vector<32x256xf32>
    %c0_6 = arith.constant 0 : index
    %c0_7 = arith.constant 0 : index
    %5 = vector.load %arg4[%c0_6, %c0_7] : memref<32x1xf32, #tpu.memory_space<vmem>>, vector<32x1xf32>
    %6 = vector.broadcast %5 : vector<32x1xf32> to vector<32x256xf32>
    %7 = arith.addf %4, %6 : vector<32x256xf32>
    %cst_8 = arith.constant 0.00999999977 : f32
    %8 = vector.broadcast %cst_8 : f32 to vector<32x256xf32>
    %9 = arith.mulf %8, %7 : vector<32x256xf32>
    %10 = arith.maximumf %7, %9 : vector<32x256xf32>
    %c0_9 = arith.constant 0 : index
    %c0_10 = arith.constant 0 : index
    %11 = vector.load %arg5[%c0_9, %c0_10] : memref<32x32xf32, #tpu.memory_space<vmem>>, vector<32x32xf32>
    %cst_11 = arith.constant dense<0.000000e+00> : vector<32x256xf32>
    %12 = tpu.matmul %11, %10, %cst_11 {dimension_numbers = #tpu.dot_dimension_numbers<[1], [0], [0], [1], [0, 0, 1, 1], [], []>} : vector<32x32xf32>, vector<32x256xf32>, vector<32x256xf32> -> vector<32x256xf32>
    %c0_12 = arith.constant 0 : index
    %c0_13 = arith.constant 0 : index
    %13 = vector.load %arg6[%c0_12, %c0_13] : memref<32x1xf32, #tpu.memory_space<vmem>>, vector<32x1xf32>
    %14 = vector.broadcast %13 : vector<32x1xf32> to vector<32x256xf32>
    %15 = arith.addf %12, %14 : vector<32x256xf32>
    %cst_14 = arith.constant 0.00999999977 : f32
    %16 = vector.broadcast %cst_14 : f32 to vector<32x256xf32>
    %17 = arith.mulf %16, %15 : vector<32x256xf32>
    %18 = arith.maximumf %15, %17 : vector<32x256xf32>
    %c0_15 = arith.constant 0 : index
    %c0_16 = arith.constant 0 : index
    %19 = vector.load %arg7[%c0_15, %c0_16] : memref<1x32xf32, #tpu.memory_space<vmem>>, vector<1x32xf32>
    %cst_17 = arith.constant dense<0.000000e+00> : vector<1x256xf32>
    %20 = tpu.matmul %19, %18, %cst_17 {dimension_numbers = #tpu.dot_dimension_numbers<[1], [0], [0], [1], [0, 0, 1, 1], [], []>} : vector<1x32xf32>, vector<32x256xf32>, vector<1x256xf32> -> vector<1x256xf32>
    %c0_18 = arith.constant 0 : index
    %c0_19 = arith.constant 0 : index
    %21 = vector.load %arg8[%c0_18, %c0_19] : memref<1x1xf32, #tpu.memory_space<vmem>>, vector<1x1xf32>
    %22 = vector.broadcast %21 : vector<1x1xf32> to vector<1x256xf32>
    %23 = arith.addf %20, %22 : vector<1x256xf32>
    %24 = math.tanh %23 : vector<1x256xf32>
    %c0_20 = arith.constant 0 : index
    %c0_21 = arith.constant 0 : index
    %25 = vector.load %arg9[%c0_20, %c0_21] : memref<1x256xf32, #tpu.memory_space<vmem>>, vector<1x256xf32>
    tpu.vector_store %arg9[%c0_20, %c0_21], %24 {strides = array<i32>} : memref<1x256xf32, #tpu.memory_space<vmem>>, vector<1x256xf32>,
    return
  }
  func.func @transform_0(%arg0: i32) -> (i32, i32) {
    %c0_i32 = arith.constant 0 : i32
    %c0_i32_0 = arith.constant 0 : i32
    return %c0_i32, %arg0 : i32, i32
  }
  func.func @transform_1(%arg0: i32) -> (i32, i32) {
    %c0_i32 = arith.constant 0 : i32
    %c0_i32_0 = arith.constant 0 : i32
    %c0_i32_1 = arith.constant 0 : i32
    return %c0_i32, %c0_i32_0 : i32, i32
  }
  func.func @transform_2(%arg0: i32) -> (i32, i32) {
    %c0_i32 = arith.constant 0 : i32
    %c0_i32_0 = arith.constant 0 : i32
    %c0_i32_1 = arith.constant 0 : i32
    return %c0_i32, %c0_i32_0 : i32, i32
  }
  func.func @transform_3(%arg0: i32) -> (i32, i32) {
    %c0_i32 = arith.constant 0 : i32
    %c0_i32_0 = arith.constant 0 : i32
    %c0_i32_1 = arith.constant 0 : i32
    return %c0_i32, %c0_i32_0 : i32, i32
  }
  func.func @transform_4(%arg0: i32) -> (i32, i32) {
    %c0_i32 = arith.constant 0 : i32
    %c0_i32_0 = arith.constant 0 : i32
    %c0_i32_1 = arith.constant 0 : i32
    return %c0_i32, %c0_i32_0 : i32, i32
  }
  func.func @transform_5(%arg0: i32) -> (i32, i32) {
    %c0_i32 = arith.constant 0 : i32
    %c0_i32_0 = arith.constant 0 : i32
    %c0_i32_1 = arith.constant 0 : i32
    return %c0_i32, %c0_i32_0 : i32, i32
  }
  func.func @transform_6(%arg0: i32) -> (i32, i32) {
    %c0_i32 = arith.constant 0 : i32
    %c0_i32_0 = arith.constant 0 : i32
    %c0_i32_1 = arith.constant 0 : i32
    return %c0_i32, %c0_i32_0 : i32, i32
  }
  func.func @transform_7(%arg0: i32) -> (i32, i32) {
    %c0_i32 = arith.constant 0 : i32
    %c0_i32_0 = arith.constant 0 : i32
    %c0_i32_1 = arith.constant 0 : i32
    return %c0_i32, %c0_i32_0 : i32, i32
  }
  func.func @transform_8(%arg0: i32) -> (i32, i32) {
    %c0_i32 = arith.constant 0 : i32
    %c0_i32_0 = arith.constant 0 : i32
    return %c0_i32, %arg0 : i32, i32
  }
}

</mosaic_0001>

<llo_original>
// kernel: tpu_custom_call.1
$region0: #{tpu_custom_call.1}
  #allocation0 [shape = 'u32[]', space=smem, size = 0x4, offset = 0x4, fixed_abs, tag = 'smem constant byte address 0x4 - core index']
  #allocation1 [shape = 'u32[144,128]{1,0:T(1,128)}', space=vmem, size = 0x12000, scoped, tag = 'internal scratch']
  #allocation2 [shape = 'f32[1,1]{1,0:T(1,128)S(1)}', space=vmem, size = 0x200, scoped, tag = 'scoped memory for tpu_custom_call.1']
  %s0 = inlined_call_operand.vmem [shape: f32[8,512], index: 0, kind: input, shape index: {}]
  %s1 = inlined_call_operand.vmem [shape: f32[32,8], index: 1, kind: input, shape index: {}]
  %s2 = inlined_call_operand.vmem [shape: f32[32,32], index: 2, kind: input, shape index: {}]
  %s3 = inlined_call_operand.vmem [shape: f32[32,1], index: 3, kind: input, shape index: {}]
  %s4 = inlined_call_operand.vmem [shape: f32[32,32], index: 4, kind: input, shape index: {}]
  %s5 = inlined_call_operand.vmem [shape: f32[32,1], index: 5, kind: input, shape index: {}]
  %s6 = inlined_call_operand.vmem [shape: f32[1,32], index: 6, kind: input, shape index: {}]
  %s7 = inlined_call_operand.<no memory space> [shape: f32[1,1], index: 7, kind: input, shape index: {}]
  %s8 = inlined_call_operand.hbm [shape: f32[1,512], index: 8, kind: output, shape index: {}]
  %s9 = sld [smem:[#allocation0]]
  $region65: #{tpu_custom_call.1} parent=0
    _
  %s11 = ssub.s32 1, %s9
  %s12 = scalar_select 0, %s11, %s9
  %v13 = vstv %s7
  %14 = vst [vmem:[#allocation2] sm:$0x1] %v13
  $region1: #{tpu_custom_call.1} parent=0
    #allocation3 [shape = 'u8[2048]{0}', space=vmem, size = 0x800, scoped, tag = 'output window, operand 0']
    #allocation4 [shape = 's32[2]{0}', space=sflag, size = 0x8, scoped, tag = 'scoped memory for tpu_custom_call.1']
    %15 = vsyncpa [#allocation4], 0
    %s16 = scalar_lea.sflag [#allocation4], 1
    %17 = vsyncpa %s16, 0
    loop: start=0, step=1, limit=4
    $region2: #{tpu_custom_call.1} parent=1 // loop_pre_header
      _
    $region3: #{tpu_custom_call.1} parent=1 // loop_header
      %s19 = sphi 0, %s23
      %p20 = scmp.ge.s32.totalorder %s19, 4
      %s29 = sphi 0, %s31
      %s32 = sphi 0, %s29
      %s33 = sphi 0, %s32
      %s49 = sphi 0, %s33
      %s53 = sphi 0, %s53
      %s55 = sphi 0, %s53
      %s56 = sphi 0, %s55
      %s70 = sphi 0, %s56
      %s74 = sphi 0, %s74
      %s76 = sphi 0, %s74
      %s77 = sphi 0, %s76
      %s91 = sphi 0, %s77
      %s95 = sphi 0, %s95
      %s97 = sphi 0, %s95
      %s98 = sphi 0, %s97
      %s112 = sphi 0, %s98
      %s116 = sphi 0, %s116
      %s118 = sphi 0, %s116
      %s119 = sphi 0, %s118
      %s133 = sphi 0, %s119
      %s137 = sphi 0, %s137
      %s139 = sphi 0, %s137
      %s140 = sphi 0, %s139
      %s154 = sphi 0, %s140
      %s158 = sphi 0, %s158
      %s160 = sphi 0, %s158
      %s161 = sphi 0, %s160
      %s175 = sphi 0, %s161
      %s179 = sphi 0, %s179
      %s181 = sphi 0, %s179
      %s182 = sphi 0, %s181
      %s196 = sphi 0, %s182
      %s202 = sphi 0, %s204
      %s205 = sphi 0, %s202
      %s206 = sphi 0, %s205
      %s222 = sphi 0, %s206
    $region4: #{tpu_custom_call.1} parent=1 // loop_header_branch
      %22 = sbr.rel (%p20) target = $region8
    $region5: #{tpu_custom_call.1} parent=1 // loop_body
      %s24 = ssub.s32 %s19, 1
      %s25 = ssub.s32 %s19, 2
      %s26 = sadd.s32 %s19, 1
      %s27 = ssub.s32 %s19, %s26
      %p28 = scmp.eq.s32.totalorder %s27, 0
      %s30 = sadd.s32 %s29, 1
      %s31 = scalar_select %p28, %s29, %s30
      %p34 = pneg %p28
      %p35 = scmp.eq.s32.totalorder %s19, 1
      %p36 = por %p34, %p35
      %p37 = scmp.ne.s32.totalorder %s29, %s32
      %p38 = scmp.eq.s32.totalorder %s19, 0
      %p39 = por %p37, %p38
      %p40 = scmp.ne.s32.totalorder %s29, %s32
      %p41 = scmp.eq.s32.totalorder %s24, 1
      %p42 = por %p40, %p41
      %p43 = scmp.ne.s32.totalorder %s32, %s33
      %p44 = scmp.eq.s32.totalorder %s24, 0
      %p45 = por %p43, %p44
      %p46 = scmp.ne.s32.totalorder %s32, %s33
      %p47 = scmp.eq.s32.totalorder %s25, 1
      %p48 = por %p46, %p47
      %p50 = scmp.ne.s32.totalorder %s33, %s49
      %p51 = scmp.eq.s32.totalorder %s25, 0
      %p52 = por %p50, %p51
      %s54 = sadd.s32 %s53, 1
      %p57 = scmp.eq.s32.totalorder %s19, 1
      %p58 = scmp.ne.s32.totalorder %s53, %s55
      %p59 = scmp.eq.s32.totalorder %s19, 0
      %p60 = por %p58, %p59
      %p61 = scmp.ne.s32.totalorder %s53, %s55
      %p62 = scmp.eq.s32.totalorder %s24, 1
      %p63 = por %p61, %p62
      %p64 = scmp.ne.s32.totalorder %s55, %s56
      %p65 = scmp.eq.s32.totalorder %s24, 0
      %p66 = por %p64, %p65
      %p67 = scmp.ne.s32.totalorder %s55, %s56
      %p68 = scmp.eq.s32.totalorder %s25, 1
      %p69 = por %p67, %p68
      %p71 = scmp.ne.s32.totalorder %s56, %s70
      %p72 = scmp.eq.s32.totalorder %s25, 0
      %p73 = por %p71, %p72
      %s75 = sadd.s32 %s74, 1
      %p78 = scmp.eq.s32.totalorder %s19, 1
      %p79 = scmp.ne.s32.totalorder %s74, %s76
      %p80 = scmp.eq.s32.totalorder %s19, 0
      %p81 = por %p79, %p80
      %p82 = scmp.ne.s32.totalorder %s74, %s76
      %p83 = scmp.eq.s32.totalorder %s24, 1
      %p84 = por %p82, %p83
      %p85 = scmp.ne.s32.totalorder %s76, %s77
      %p86 = scmp.eq.s32.totalorder %s24, 0
      %p87 = por %p85, %p86
      %p88 = scmp.ne.s32.totalorder %s76, %s77
      %p89 = scmp.eq.s32.totalorder %s25, 1
      %p90 = por %p88, %p89
      %p92 = scmp.ne.s32.totalorder %s77, %s91
      %p93 = scmp.eq.s32.totalorder %s25, 0
      %p94 = por %p92, %p93
      %s96 = sadd.s32 %s95, 1
      %p99 = scmp.eq.s32.totalorder %s19, 1
      %p100 = scmp.ne.s32.totalorder %s95, %s97
      %p101 = scmp.eq.s32.totalorder %s19, 0
      %p102 = por %p100, %p101
      %p103 = scmp.ne.s32.totalorder %s95, %s97
      %p104 = scmp.eq.s32.totalorder %s24, 1
      %p105 = por %p103, %p104
      %p106 = scmp.ne.s32.totalorder %s97, %s98
      %p107 = scmp.eq.s32.totalorder %s24, 0
      %p108 = por %p106, %p107
      %p109 = scmp.ne.s32.totalorder %s97, %s98
      %p110 = scmp.eq.s32.totalorder %s25, 1
      %p111 = por %p109, %p110
      %p113 = scmp.ne.s32.totalorder %s98, %s112
      %p114 = scmp.eq.s32.totalorder %s25, 0
      %p115 = por %p113, %p114
      %s117 = sadd.s32 %s116, 1
      %p120 = scmp.eq.s32.totalorder %s19, 1
      %p121 = scmp.ne.s32.totalorder %s116, %s118
      %p122 = scmp.eq.s32.totalorder %s19, 0
      %p123 = por %p121, %p122
      %p124 = scmp.ne.s32.totalorder %s116, %s118
      %p125 = scmp.eq.s32.totalorder %s24, 1
      %p126 = por %p124, %p125
      %p127 = scmp.ne.s32.totalorder %s118, %s119
      %p128 = scmp.eq.s32.totalorder %s24, 0
      %p129 = por %p127, %p128
      %p130 = scmp.ne.s32.totalorder %s118, %s119
      %p131 = scmp.eq.s32.totalorder %s25, 1
      %p132 = por %p130, %p131
      %p134 = scmp.ne.s32.totalorder %s119, %s133
      %p135 = scmp.eq.s32.totalorder %s25, 0
      %p136 = por %p134, %p135
      %s138 = sadd.s32 %s137, 1
      %p141 = scmp.eq.s32.totalorder %s19, 1
      %p142 = scmp.ne.s32.totalorder %s137, %s139
      %p143 = scmp.eq.s32.totalorder %s19, 0
      %p144 = por %p142, %p143
      %p145 = scmp.ne.s32.totalorder %s137, %s139
      %p146 = scmp.eq.s32.totalorder %s24, 1
      %p147 = por %p145, %p146
      %p148 = scmp.ne.s32.totalorder %s139, %s140
      %p149 = scmp.eq.s32.totalorder %s24, 0
      %p150 = por %p148, %p149
      %p151 = scmp.ne.s32.totalorder %s139, %s140
      %p152 = scmp.eq.s32.totalorder %s25, 1
      %p153 = por %p151, %p152
      %p155 = scmp.ne.s32.totalorder %s140, %s154
      %p156 = scmp.eq.s32.totalorder %s25, 0
      %p157 = por %p155, %p156
      %s159 = sadd.s32 %s158, 1
      %p162 = scmp.eq.s32.totalorder %s19, 1
      %p163 = scmp.ne.s32.totalorder %s158, %s160
      %p164 = scmp.eq.s32.totalorder %s19, 0
      %p165 = por %p163, %p164
      %p166 = scmp.ne.s32.totalorder %s158, %s160
      %p167 = scmp.eq.s32.totalorder %s24, 1
      %p168 = por %p166, %p167
      %p169 = scmp.ne.s32.totalorder %s160, %s161
      %p170 = scmp.eq.s32.totalorder %s24, 0
      %p171 = por %p169, %p170
      %p172 = scmp.ne.s32.totalorder %s160, %s161
      %p173 = scmp.eq.s32.totalorder %s25, 1
      %p174 = por %p172, %p173
      %p176 = scmp.ne.s32.totalorder %s161, %s175
      %p177 = scmp.eq.s32.totalorder %s25, 0
      %p178 = por %p176, %p177
      %s180 = sadd.s32 %s179, 1
      %p183 = scmp.eq.s32.totalorder %s19, 1
      %p184 = scmp.ne.s32.totalorder %s179, %s181
      %p185 = scmp.eq.s32.totalorder %s19, 0
      %p186 = por %p184, %p185
      %p187 = scmp.ne.s32.totalorder %s179, %s181
      %p188 = scmp.eq.s32.totalorder %s24, 1
      %p189 = por %p187, %p188
      %p190 = scmp.ne.s32.totalorder %s181, %s182
      %p191 = scmp.eq.s32.totalorder %s24, 0
      %p192 = por %p190, %p191
      %p193 = scmp.ne.s32.totalorder %s181, %s182
      %p194 = scmp.eq.s32.totalorder %s25, 1
      %p195 = por %p193, %p194
      %p197 = scmp.ne.s32.totalorder %s182, %s196
      %p198 = scmp.eq.s32.totalorder %s25, 0
      %p199 = por %p197, %p198
      %s200 = ssub.s32 %s19, %s26
      %p201 = scmp.eq.s32.totalorder %s200, 0
      %s203 = sadd.s32 %s202, 1
      %s204 = scalar_select %p201, %s202, %s203
      %p207 = pneg %p201
      %p208 = scmp.eq.s32.totalorder %s19, 1
      %p209 = por %p207, %p208
      %p210 = scmp.ne.s32.totalorder %s202, %s205
      %p211 = scmp.eq.s32.totalorder %s19, 0
      %p212 = por %p210, %p211
      %p213 = scmp.ne.s32.totalorder %s202, %s205
      %p214 = scmp.eq.s32.totalorder %s24, 1
      %p215 = por %p213, %p214
      %p216 = scmp.ne.s32.totalorder %s205, %s206
      %p217 = scmp.eq.s32.totalorder %s24, 0
      %p218 = por %p216, %p217
      %p219 = scmp.ne.s32.totalorder %s205, %s206
      %p220 = scmp.eq.s32.totalorder %s25, 1
      %p221 = por %p219, %p220
      %p223 = scmp.ne.s32.totalorder %s206, %s222
      %p224 = scmp.eq.s32.totalorder %s25, 0
      %p225 = por %p223, %p224
      %p226 = scmp.le.s32.totalorder 1, %s19
      %p227 = scmp.lt.s32.totalorder %s19, 3
      %p228 = pnand %p226, %p227
      %p229 = pneg %p228
      // Predicated region
      $region9: #{tpu_custom_call.1} parent=5 // pred_check
        _
      $region10: #{tpu_custom_call.1} parent=5 // pred_check_branch
        %231 = sbr.rel (%p228) target = $region12
      $region11: #{tpu_custom_call.1} parent=5 // pred_region
        %s232 = ssub.s32 %s19, 1
        // Predicated region
        $region13: #{tpu_custom_call.1} parent=11 // pred_check
          %p233 = pneg %p66
        $region14: #{tpu_custom_call.1} parent=11 // pred_check_branch
          %235 = sbr.rel (%p233) target = $region16
        $region15: #{tpu_custom_call.1} parent=11 // pred_region
          _
        $region16: #{tpu_custom_call.1} parent=11 // pred_fallthru
          _
        // Predicated region
        $region17: #{tpu_custom_call.1} parent=11 // pred_check
          %p236 = pneg %p87
        $region18: #{tpu_custom_call.1} parent=11 // pred_check_branch
          %238 = sbr.rel (%p236) target = $region20
        $region19: #{tpu_custom_call.1} parent=11 // pred_region
          _
        $region20: #{tpu_custom_call.1} parent=11 // pred_fallthru
          _
        // Predicated region
        $region21: #{tpu_custom_call.1} parent=11 // pred_check
          %p239 = pneg %p108
        $region22: #{tpu_custom_call.1} parent=11 // pred_check_branch
          %241 = sbr.rel (%p239) target = $region24
        $region23: #{tpu_custom_call.1} parent=11 // pred_region
          _
        $region24: #{tpu_custom_call.1} parent=11 // pred_fallthru
          _
        // Predicated region
        $region25: #{tpu_custom_call.1} parent=11 // pred_check
          %p242 = pneg %p129
        $region26: #{tpu_custom_call.1} parent=11 // pred_check_branch
          %244 = sbr.rel (%p242) target = $region28
        $region27: #{tpu_custom_call.1} parent=11 // pred_region
          _
        $region28: #{tpu_custom_call.1} parent=11 // pred_fallthru
          _
        // Predicated region
        $region29: #{tpu_custom_call.1} parent=11 // pred_check
          %p245 = pneg %p150
        $region30: #{tpu_custom_call.1} parent=11 // pred_check_branch
          %247 = sbr.rel (%p245) target = $region32
        $region31: #{tpu_custom_call.1} parent=11 // pred_region
          _
        $region32: #{tpu_custom_call.1} parent=11 // pred_fallthru
          _
        // Predicated region
        $region33: #{tpu_custom_call.1} parent=11 // pred_check
          %p248 = pneg %p171
        $region34: #{tpu_custom_call.1} parent=11 // pred_check_branch
          %250 = sbr.rel (%p248) target = $region36
        $region35: #{tpu_custom_call.1} parent=11 // pred_region
          _
        $region36: #{tpu_custom_call.1} parent=11 // pred_fallthru
          _
        // Predicated region
        $region37: #{tpu_custom_call.1} parent=11 // pred_check
          %p251 = pneg %p192
        $region38: #{tpu_custom_call.1} parent=11 // pred_check_branch
          %253 = sbr.rel (%p251) target = $region40
        $region39: #{tpu_custom_call.1} parent=11 // pred_region
          _
        $region40: #{tpu_custom_call.1} parent=11 // pred_fallthru
          _
      $region12: #{tpu_custom_call.1} parent=5 // pred_fallthru
        _
      %p254 = scmp.lt.s32.totalorder %s19, 2
      // Predicated region
      $region41: #{tpu_custom_call.1} parent=5 // pred_check
        %p255 = pneg %p254
      $region42: #{tpu_custom_call.1} parent=5 // pred_check_branch
        %257 = sbr.rel (%p255) target = $region44
      $region43: #{tpu_custom_call.1} parent=5 // pred_region
        // Predicated region
        $region45: #{tpu_custom_call.1} parent=43 // pred_check
          %p258 = pneg %p39
        $region46: #{tpu_custom_call.1} parent=43 // pred_check_branch
          %260 = sbr.rel (%p258) target = $region48
        $region47: #{tpu_custom_call.1} parent=43 // pred_region
          %s261 = smul.u32 2, %s19
          %p262 = scmp.lt.s32.totalorder %s261, 3
          %s263 = scalar_select %p262, %s261, 3
          %s264 = smul.addr %s263, 8
          %s265 = scalar_lea.vmem %s0, %s264
          %s266 = smul.u32 2, %s19
        $region48: #{tpu_custom_call.1} parent=43 // pred_fallthru
          _
      $region44: #{tpu_custom_call.1} parent=5 // pred_fallthru
        _
      %p267 = scmp.le.s32.totalorder 1, %s19
      %p268 = scmp.lt.s32.totalorder %s19, 3
      %p269 = pnand %p267, %p268
      %p270 = pneg %p269
      // Predicated region
      $region49: #{tpu_custom_call.1} parent=5 // pred_check
        _
      $region50: #{tpu_custom_call.1} parent=5 // pred_check_branch
        %272 = sbr.rel (%p269) target = $region52
      $region51: #{tpu_custom_call.1} parent=5 // pred_region
        %s273 = ssub.s32 %s19, 1
        %s274 = smul.u32 2, %s24
        %p275 = scmp.lt.s32.totalorder %s274, 3
        %s276 = scalar_select %p275, %s274, 3
        %s277 = smul.addr %s276, 8
        %s278 = scalar_lea.vmem %s0, %s277
        %p279 = pneg %p45
        %p280 = pneg %p42
        %p281 = pneg %p66
        %p282 = pneg %p63
        %p283 = pneg %p87
        %p284 = pneg %p84
        %p285 = pneg %p108
        %p286 = pneg %p105
        %p287 = pneg %p129
        %p288 = pneg %p126
        %p289 = pneg %p150
        %p290 = pneg %p147
        %p291 = pneg %p171
        %p292 = pneg %p168
        %p293 = pneg %p192
        %p294 = pneg %p189
        %p295 = pneg %p218
        %p296 = pneg %p215
        %s297 = sand.u32 %s205, 1
        %s298 = scalar_lea.sflag [#allocation4], %s297
        %s299 = sand.u32 %s205, 1
        %s300 = smul.addr %s299, 2
        %s301 = scalar_lea.vmem [#allocation3], %s300
        %s302 = smul.u32 2, %s24
        %p303 = scmp.lt.s32.totalorder %s302, 3
        %s304 = scalar_select %p303, %s302, 3
        %s305 = smul.addr %s304, 8
        %s306 = scalar_lea.vmem %s0, %s305
        %s307 = smul.u32 2, %s24
        %s308 = smul.u32 2, %s24
        %v309 = vld [vmem:[%s306] sm:$0xff]
        %v310 = vld [vmem:[%s306 + $0x8] sm:$0xff]
        %v311 = vld [vmem:[%s1] sm:$0xff]
        %v312 = vld [vmem:[%s1 + $0x8] sm:$0xff]
        %v313 = vld [vmem:[%s1 + $0x10] sm:$0xff]
        %v314 = vld [vmem:[%s1 + $0x18] sm:$0xff]
        %vm315 = vcmask 64512
        %v317 = vsel %vm315, %v311, 0
        %v320 = vsel %vm315, %v312, 0
        %v323 = vsel %vm315, %v313, 0
        %v326 = vsel %vm315, %v314, 0
        %328 = vmatprep.subr.mxu0 %v310
        %329 = vmatpush1.msra.mxu0 %v309
        %330 = vmatprep.subr.mxu0 0.0
        %331 = vmatpush1.msra.mxu0 0.0
        %332 = vmatprep.subr.mxu0 0.0
        %333 = vmatpush1.msra.mxu0 0.0
        %334 = vmatprep.subr.mxu0 0.0
        %335 = vmatpush1.msra.mxu0 0.0
        %336 = vmatprep.subr.mxu0 0.0
        %337 = vmatpush1.msra.mxu0 0.0
        %338 = vmatprep.subr.mxu0 0.0
        %339 = vmatpush1.msra.mxu0 0.0
        %340 = vmatprep.subr.mxu0 0.0
        %341 = vmatpush1.msra.mxu0 0.0
        %342 = vmatprep.subr.mxu0 0.0
        %343 = vmatpush1.msra.mxu0 0.0
        %344 = vmatprep.subr.mxu0 0.0
        %345 = vmatpush1.msra.mxu0 0.0
        %346 = vmatprep.subr.mxu0 0.0
        %347 = vmatpush1.msra.mxu0 0.0
        %348 = vmatprep.subr.mxu0 0.0
        %349 = vmatpush1.msra.mxu0 0.0
        %350 = vmatprep.subr.mxu0 0.0
        %351 = vmatpush1.msra.mxu0 0.0
        %352 = vmatprep.subr.mxu0 0.0
        %353 = vmatpush1.msra.mxu0 0.0
        %354 = vmatprep.subr.mxu0 0.0
        %355 = vmatpush1.msra.mxu0 0.0
        %356 = vmatprep.subr.mxu0 0.0
        %357 = vmatpush1.msra.mxu0 0.0
        %358 = vmatprep.subr.mxu0 0.0
        %359 = vmatpush1.msra.mxu0 0.0
        %360 = vmatprep.subr.mxu0 0.0
        %361 = vmatpush1.msra.mxu0 0.0
        %362 = vmatprep.subr.mxu0 0.0
        %363 = vmatpush1.msra.mxu0 0.0
        %364 = vmatprep.subr.mxu0 0.0
        %365 = vmatpush1.msra.mxu0 0.0
        %366 = vmatprep.subr.mxu0 0.0
        %367 = vmatpush1.msra.mxu0 0.0
        %368 = vmatprep.subr.mxu0 0.0
        %369 = vmatpush1.msra.mxu0 0.0
        %370 = vmatprep.subr.mxu0 0.0
        %371 = vmatpush1.msra.mxu0 0.0
        %372 = vmatprep.subr.mxu0 0.0
        %373 = vmatpush1.msra.mxu0 0.0
        %374 = vmatprep.subr.mxu0 0.0
        %375 = vmatpush1.msra.mxu0 0.0
        %376 = vmatprep.subr.mxu0 0.0
        %377 = vmatpush1.msra.mxu0 0.0
        %378 = vmatprep.subr.mxu0 0.0
        %379 = vmatpush1.msra.mxu0 0.0
        %380 = vmatprep.subr.mxu0 0.0
        %381 = vmatpush1.msra.mxu0 0.0
        %382 = vmatprep.subr.mxu0 0.0
        %383 = vmatpush1.msra.mxu0 0.0
        %384 = vmatprep.subr.mxu0 0.0
        %385 = vmatpush1.msra.mxu0 0.0
        %386 = vmatprep.subr.mxu0 0.0
        %387 = vmatpush1.msra.mxu0 0.0
        %388 = vmatprep.subr.mxu0 0.0
        %389 = vmatpush1.msra.mxu0 0.0
        %390 = vmatprep.subr.mxu0 0.0
        %391 = vmatpush1.msra.mxu0 0.0
        %392 = vmatprep.mubr.f32.mxu0 0.0
        %393 = vmatmul.mubr.f32.gmra.mrb[0].mxu0 %v317
        %v394 = vpop.f32.mrb[0].mxu0
        %v395 = vadd.f32 0.0, %v394
        %v396 = vpop.f32.mrb[0].mxu0
        %v397 = vadd.f32 0.0, %v396
        %398 = vmatprep.mubr.f32.mxu0 0.0
        %399 = vmatmul.mubr.f32.gmra.mrb[0].mxu0 %v320
        %v400 = vpop.f32.mrb[0].mxu0
        %v401 = vadd.f32 0.0, %v400
        %v402 = vpop.f32.mrb[0].mxu0
        %v403 = vadd.f32 0.0, %v402
        %404 = vmatprep.mubr.f32.mxu0 0.0
        %405 = vmatmul.mubr.f32.gmra.mrb[0].mxu0 %v323
        %v406 = vpop.f32.mrb[0].mxu0
        %v407 = vadd.f32 0.0, %v406
        %v408 = vpop.f32.mrb[0].mxu0
        %v409 = vadd.f32 0.0, %v408
        %410 = vmatprep.mubr.f32.mxu0 0.0
        %411 = vmatmul.mubr.f32.gmra.mrb[0].mxu0 %v326
        %v412 = vpop.f32.mrb[0].mxu0
        %v413 = vadd.f32 0.0, %v412
        %v414 = vpop.f32.mrb[0].mxu0
        %v415 = vadd.f32 0.0, %v414
        %416 = vdwg.mxu0
        %v417 = vld [vmem:[%s2] sm:$0xff]
        %v418 = vld [vmem:[%s2 + $0x8] sm:$0xff]
        %v419 = vld [vmem:[%s2 + $0x10] sm:$0xff]
        %v420 = vld [vmem:[%s2 + $0x18] sm:$0xff]
        %v421 = vld [vmem:[%s3] sm:$0xff]
        %v422 = vld [vmem:[%s3 + $0x8] sm:$0xff]
        %v423 = vld [vmem:[%s3 + $0x10] sm:$0xff]
        %v424 = vld [vmem:[%s3 + $0x18] sm:$0xff]
        %426 = vset.pattern.permute.xlu0 0
        %427 = vperm.xlu0 %426, %v421
        %v428 = vpop.permute.xlu0 %427
        %431 = vset.pattern.permute.xlu0 0
        %432 = vperm.xlu0 %431, %v422
        %v433 = vpop.permute.xlu0 %432
        %436 = vset.pattern.permute.xlu0 0
        %437 = vperm.xlu0 %436, %v423
        %v438 = vpop.permute.xlu0 %437
        %441 = vset.pattern.permute.xlu0 0
        %442 = vperm.xlu0 %441, %v424
        %v443 = vpop.permute.xlu0 %442
        %vm445 = vcmask 261120
        %v447 = vsel %vm445, %v417, 0
        %v450 = vsel %vm445, %v418, 0
        %v453 = vsel %vm445, %v419, 0
        %v456 = vsel %vm445, %v420, 0
        %458 = vmatprep.subr.mxu0 %v397
        %459 = vmatpush1.msra.mxu0 %v395
        %460 = vmatprep.subr.mxu0 %v403
        %461 = vmatpush1.msra.mxu0 %v401
        %462 = vmatprep.subr.mxu0 %v409
        %463 = vmatpush1.msra.mxu0 %v407
        %464 = vmatprep.subr.mxu0 %v415
        %465 = vmatpush1.msra.mxu0 %v413
        %466 = vmatprep.subr.mxu0 0.0
        %467 = vmatpush1.msra.mxu0 0.0
        %468 = vmatprep.subr.mxu0 0.0
        %469 = vmatpush1.msra.mxu0 0.0
        %470 = vmatprep.subr.mxu0 0.0
        %471 = vmatpush1.msra.mxu0 0.0
        %472 = vmatprep.subr.mxu0 0.0
        %473 = vmatpush1.msra.mxu0 0.0
        %474 = vmatprep.subr.mxu0 0.0
        %475 = vmatpush1.msra.mxu0 0.0
        %476 = vmatprep.subr.mxu0 0.0
        %477 = vmatpush1.msra.mxu0 0.0
        %478 = vmatprep.subr.mxu0 0.0
        %479 = vmatpush1.msra.mxu0 0.0
        %480 = vmatprep.subr.mxu0 0.0
        %481 = vmatpush1.msra.mxu0 0.0
        %482 = vmatprep.subr.mxu0 0.0
        %483 = vmatpush1.msra.mxu0 0.0
        %484 = vmatprep.subr.mxu0 0.0
        %485 = vmatpush1.msra.mxu0 0.0
        %486 = vmatprep.subr.mxu0 0.0
        %487 = vmatpush1.msra.mxu0 0.0
        %488 = vmatprep.subr.mxu0 0.0
        %489 = vmatpush1.msra.mxu0 0.0
        %490 = vmatprep.subr.mxu0 0.0
        %491 = vmatpush1.msra.mxu0 0.0
        %492 = vmatprep.subr.mxu0 0.0
        %493 = vmatpush1.msra.mxu0 0.0
        %494 = vmatprep.subr.mxu0 0.0
        %495 = vmatpush1.msra.mxu0 0.0
        %496 = vmatprep.subr.mxu0 0.0
        %497 = vmatpush1.msra.mxu0 0.0
        %498 = vmatprep.subr.mxu0 0.0
        %499 = vmatpush1.msra.mxu0 0.0
        %500 = vmatprep.subr.mxu0 0.0
        %501 = vmatpush1.msra.mxu0 0.0
        %502 = vmatprep.subr.mxu0 0.0
        %503 = vmatpush1.msra.mxu0 0.0
        %504 = vmatprep.subr.mxu0 0.0
        %505 = vmatpush1.msra.mxu0 0.0
        %506 = vmatprep.subr.mxu0 0.0
        %507 = vmatpush1.msra.mxu0 0.0
        %508 = vmatprep.subr.mxu0 0.0
        %509 = vmatpush1.msra.mxu0 0.0
        %510 = vmatprep.subr.mxu0 0.0
        %511 = vmatpush1.msra.mxu0 0.0
        %512 = vmatprep.subr.mxu0 0.0
        %513 = vmatpush1.msra.mxu0 0.0
        %514 = vmatprep.subr.mxu0 0.0
        %515 = vmatpush1.msra.mxu0 0.0
        %516 = vmatprep.subr.mxu0 0.0
        %517 = vmatpush1.msra.mxu0 0.0
        %518 = vmatprep.subr.mxu0 0.0
        %519 = vmatpush1.msra.mxu0 0.0
        %520 = vmatprep.subr.mxu0 0.0
        %521 = vmatpush1.msra.mxu0 0.0
        %522 = vmatprep.mubr.f32.mxu0 0.0
        %523 = vmatmul.mubr.f32.gmra.mrb[0].mxu0 %v447
        %v524 = vpop.f32.mrb[0].mxu0
        %v525 = vadd.f32 %v428, %v524
        %v526 = vpop.f32.mrb[0].mxu0
        %v527 = vadd.f32 %v428, %v526
        %528 = vmatprep.mubr.f32.mxu0 0.0
        %529 = vmatmul.mubr.f32.gmra.mrb[0].mxu0 %v450
        %v530 = vpop.f32.mrb[0].mxu0
        %v531 = vadd.f32 %v433, %v530
        %v532 = vpop.f32.mrb[0].mxu0
        %v533 = vadd.f32 %v433, %v532
        %534 = vmatprep.mubr.f32.mxu0 0.0
        %535 = vmatmul.mubr.f32.gmra.mrb[0].mxu0 %v453
        %v536 = vpop.f32.mrb[0].mxu0
        %v537 = vadd.f32 %v438, %v536
        %v538 = vpop.f32.mrb[0].mxu0
        %v539 = vadd.f32 %v438, %v538
        %540 = vmatprep.mubr.f32.mxu0 0.0
        %541 = vmatmul.mubr.f32.gmra.mrb[0].mxu0 %v456
        %v542 = vpop.f32.mrb[0].mxu0
        %v543 = vadd.f32 %v443, %v542
        %v544 = vpop.f32.mrb[0].mxu0
        %v545 = vadd.f32 %v443, %v544
        %546 = vdwg.mxu0
        %v547 = vmul.f32 %v525, 0.01
        %v548 = vmul.f32 %v527, 0.01
        %v549 = vmul.f32 %v531, 0.01
        %v550 = vmul.f32 %v533, 0.01
        %v551 = vmul.f32 %v537, 0.01
        %v552 = vmul.f32 %v539, 0.01
        %v553 = vmul.f32 %v543, 0.01
        %v554 = vmul.f32 %v545, 0.01
        %v555 = vmax.f32 %v525, %v547
        %v556 = vmax.f32 %v527, %v548
        %v557 = vmax.f32 %v531, %v549
        %v558 = vmax.f32 %v533, %v550
        %v559 = vmax.f32 %v537, %v551
        %v560 = vmax.f32 %v539, %v552
        %v561 = vmax.f32 %v543, %v553
        %v562 = vmax.f32 %v545, %v554
        %v563 = vld [vmem:[%s4] sm:$0xff]
        %v564 = vld [vmem:[%s4 + $0x8] sm:$0xff]
        %v565 = vld [vmem:[%s4 + $0x10] sm:$0xff]
        %v566 = vld [vmem:[%s4 + $0x18] sm:$0xff]
        %v567 = vld [vmem:[%s5] sm:$0xff]
        %v568 = vld [vmem:[%s5 + $0x8] sm:$0xff]
        %v569 = vld [vmem:[%s5 + $0x10] sm:$0xff]
        %v570 = vld [vmem:[%s5 + $0x18] sm:$0xff]
        %572 = vset.pattern.permute.xlu0 0
        %573 = vperm.xlu0 %572, %v567
        %v574 = vpop.permute.xlu0 %573
        %577 = vset.pattern.permute.xlu0 0
        %578 = vperm.xlu0 %577, %v568
        %v579 = vpop.permute.xlu0 %578
        %582 = vset.pattern.permute.xlu0 0
        %583 = vperm.xlu0 %582, %v569
        %v584 = vpop.permute.xlu0 %583
        %587 = vset.pattern.permute.xlu0 0
        %588 = vperm.xlu0 %587, %v570
        %v589 = vpop.permute.xlu0 %588
        %v592 = vsel %vm445, %v563, 0
        %v595 = vsel %vm445, %v564, 0
        %v598 = vsel %vm445, %v565, 0
        %v601 = vsel %vm445, %v566, 0
        %603 = vmatprep.subr.mxu0 %v556
        %604 = vmatpush1.msra.mxu0 %v555
        %605 = vmatprep.subr.mxu0 %v558
        %606 = vmatpush1.msra.mxu0 %v557
        %607 = vmatprep.subr.mxu0 %v560
        %608 = vmatpush1.msra.mxu0 %v559
        %609 = vmatprep.subr.mxu0 %v562
        %610 = vmatpush1.msra.mxu0 %v561
        %611 = vmatprep.subr.mxu0 0.0
        %612 = vmatpush1.msra.mxu0 0.0
        %613 = vmatprep.subr.mxu0 0.0
        %614 = vmatpush1.msra.mxu0 0.0
        %615 = vmatprep.subr.mxu0 0.0
        %616 = vmatpush1.msra.mxu0 0.0
        %617 = vmatprep.subr.mxu0 0.0
        %618 = vmatpush1.msra.mxu0 0.0
        %619 = vmatprep.subr.mxu0 0.0
        %620 = vmatpush1.msra.mxu0 0.0
        %621 = vmatprep.subr.mxu0 0.0
        %622 = vmatpush1.msra.mxu0 0.0
        %623 = vmatprep.subr.mxu0 0.0
        %624 = vmatpush1.msra.mxu0 0.0
        %625 = vmatprep.subr.mxu0 0.0
        %626 = vmatpush1.msra.mxu0 0.0
        %627 = vmatprep.subr.mxu0 0.0
        %628 = vmatpush1.msra.mxu0 0.0
        %629 = vmatprep.subr.mxu0 0.0
        %630 = vmatpush1.msra.mxu0 0.0
        %631 = vmatprep.subr.mxu0 0.0
        %632 = vmatpush1.msra.mxu0 0.0
        %633 = vmatprep.subr.mxu0 0.0
        %634 = vmatpush1.msra.mxu0 0.0
        %635 = vmatprep.subr.mxu0 0.0
        %636 = vmatpush1.msra.mxu0 0.0
        %637 = vmatprep.subr.mxu0 0.0
        %638 = vmatpush1.msra.mxu0 0.0
        %639 = vmatprep.subr.mxu0 0.0
        %640 = vmatpush1.msra.mxu0 0.0
        %641 = vmatprep.subr.mxu0 0.0
        %642 = vmatpush1.msra.mxu0 0.0
        %643 = vmatprep.subr.mxu0 0.0
        %644 = vmatpush1.msra.mxu0 0.0
        %645 = vmatprep.subr.mxu0 0.0
        %646 = vmatpush1.msra.mxu0 0.0
        %647 = vmatprep.subr.mxu0 0.0
        %648 = vmatpush1.msra.mxu0 0.0
        %649 = vmatprep.subr.mxu0 0.0
        %650 = vmatpush1.msra.mxu0 0.0
        %651 = vmatprep.subr.mxu0 0.0
        %652 = vmatpush1.msra.mxu0 0.0
        %653 = vmatprep.subr.mxu0 0.0
        %654 = vmatpush1.msra.mxu0 0.0
        %655 = vmatprep.subr.mxu0 0.0
        %656 = vmatpush1.msra.mxu0 0.0
        %657 = vmatprep.subr.mxu0 0.0
        %658 = vmatpush1.msra.mxu0 0.0
        %659 = vmatprep.subr.mxu0 0.0
        %660 = vmatpush1.msra.mxu0 0.0
        %661 = vmatprep.subr.mxu0 0.0
        %662 = vmatpush1.msra.mxu0 0.0
        %663 = vmatprep.subr.mxu0 0.0
        %664 = vmatpush1.msra.mxu0 0.0
        %665 = vmatprep.subr.mxu0 0.0
        %666 = vmatpush1.msra.mxu0 0.0
        %667 = vmatprep.mubr.f32.mxu0 0.0
        %668 = vmatmul.mubr.f32.gmra.mrb[0].mxu0 %v592
        %v669 = vpop.f32.mrb[0].mxu0
        %v670 = vadd.f32 %v574, %v669
        %v671 = vpop.f32.mrb[0].mxu0
        %v672 = vadd.f32 %v574, %v671
        %673 = vmatprep.mubr.f32.mxu0 0.0
        %674 = vmatmul.mubr.f32.gmra.mrb[0].mxu0 %v595
        %v675 = vpop.f32.mrb[0].mxu0
        %v676 = vadd.f32 %v579, %v675
        %v677 = vpop.f32.mrb[0].mxu0
        %v678 = vadd.f32 %v579, %v677
        %679 = vmatprep.mubr.f32.mxu0 0.0
        %680 = vmatmul.mubr.f32.gmra.mrb[0].mxu0 %v598
        %v681 = vpop.f32.mrb[0].mxu0
        %v682 = vadd.f32 %v584, %v681
        %v683 = vpop.f32.mrb[0].mxu0
        %v684 = vadd.f32 %v584, %v683
        %685 = vmatprep.mubr.f32.mxu0 0.0
        %686 = vmatmul.mubr.f32.gmra.mrb[0].mxu0 %v601
        %v687 = vpop.f32.mrb[0].mxu0
        %v688 = vadd.f32 %v589, %v687
        %v689 = vpop.f32.mrb[0].mxu0
        %v690 = vadd.f32 %v589, %v689
        %691 = vdwg.mxu0
        %v692 = vmul.f32 %v670, 0.01
        %v693 = vmul.f32 %v672, 0.01
        %v694 = vmul.f32 %v676, 0.01
        %v695 = vmul.f32 %v678, 0.01
        %v696 = vmul.f32 %v682, 0.01
        %v697 = vmul.f32 %v684, 0.01
        %v698 = vmul.f32 %v688, 0.01
        %v699 = vmul.f32 %v690, 0.01
        %v700 = vmax.f32 %v670, %v692
        %v701 = vmax.f32 %v672, %v693
        %v702 = vmax.f32 %v676, %v694
        %v703 = vmax.f32 %v678, %v695
        %v704 = vmax.f32 %v682, %v696
        %v705 = vmax.f32 %v684, %v697
        %v706 = vmax.f32 %v688, %v698
        %v707 = vmax.f32 %v690, %v699
        %v708 = vld [vmem:[%s6] sm:$0x1]
        %v709 = vld [vmem:[#allocation2] sm:$0x1]
        %711 = vset.pattern.permute.xlu0 0
        %712 = vperm.xlu0 %711, %v709
        %v713 = vpop.permute.xlu0 %712
        %v715 = vlaneseq
        %v716 = vshrl.u32 %v715, 7
        %v717 = vsub.s32 0, %v716
        %v718 = vrot.slane %v713, %v717
        %v720 = vsel %vm445, %v708, 0
        %722 = vmatprep.subr.mxu0 %v701
        %723 = vmatpush1.msra.mxu0 %v700
        %724 = vmatprep.subr.mxu0 %v703
        %725 = vmatpush1.msra.mxu0 %v702
        %726 = vmatprep.subr.mxu0 %v705
        %727 = vmatpush1.msra.mxu0 %v704
        %728 = vmatprep.subr.mxu0 %v707
        %729 = vmatpush1.msra.mxu0 %v706
        %730 = vmatprep.subr.mxu0 0.0
        %731 = vmatpush1.msra.mxu0 0.0
        %732 = vmatprep.subr.mxu0 0.0
        %733 = vmatpush1.msra.mxu0 0.0
        %734 = vmatprep.subr.mxu0 0.0
        %735 = vmatpush1.msra.mxu0 0.0
        %736 = vmatprep.subr.mxu0 0.0
        %737 = vmatpush1.msra.mxu0 0.0
        %738 = vmatprep.subr.mxu0 0.0
        %739 = vmatpush1.msra.mxu0 0.0
        %740 = vmatprep.subr.mxu0 0.0
        %741 = vmatpush1.msra.mxu0 0.0
        %742 = vmatprep.subr.mxu0 0.0
        %743 = vmatpush1.msra.mxu0 0.0
        %744 = vmatprep.subr.mxu0 0.0
        %745 = vmatpush1.msra.mxu0 0.0
        %746 = vmatprep.subr.mxu0 0.0
        %747 = vmatpush1.msra.mxu0 0.0
        %748 = vmatprep.subr.mxu0 0.0
        %749 = vmatpush1.msra.mxu0 0.0
        %750 = vmatprep.subr.mxu0 0.0
        %751 = vmatpush1.msra.mxu0 0.0
        %752 = vmatprep.subr.mxu0 0.0
        %753 = vmatpush1.msra.mxu0 0.0
        %754 = vmatprep.subr.mxu0 0.0
        %755 = vmatpush1.msra.mxu0 0.0
        %756 = vmatprep.subr.mxu0 0.0
        %757 = vmatpush1.msra.mxu0 0.0
        %758 = vmatprep.subr.mxu0 0.0
        %759 = vmatpush1.msra.mxu0 0.0
        %760 = vmatprep.subr.mxu0 0.0
        %761 = vmatpush1.msra.mxu0 0.0
        %762 = vmatprep.subr.mxu0 0.0
        %763 = vmatpush1.msra.mxu0 0.0
        %764 = vmatprep.subr.mxu0 0.0
        %765 = vmatpush1.msra.mxu0 0.0
        %766 = vmatprep.subr.mxu0 0.0
        %767 = vmatpush1.msra.mxu0 0.0
        %768 = vmatprep.subr.mxu0 0.0
        %769 = vmatpush1.msra.mxu0 0.0
        %770 = vmatprep.subr.mxu0 0.0
        %771 = vmatpush1.msra.mxu0 0.0
        %772 = vmatprep.subr.mxu0 0.0
        %773 = vmatpush1.msra.mxu0 0.0
        %774 = vmatprep.subr.mxu0 0.0
        %775 = vmatpush1.msra.mxu0 0.0
        %776 = vmatprep.subr.mxu0 0.0
        %777 = vmatpush1.msra.mxu0 0.0
        %778 = vmatprep.subr.mxu0 0.0
        %779 = vmatpush1.msra.mxu0 0.0
        %780 = vmatprep.subr.mxu0 0.0
        %781 = vmatpush1.msra.mxu0 0.0
        %782 = vmatprep.subr.mxu0 0.0
        %783 = vmatpush1.msra.mxu0 0.0
        %784 = vmatprep.subr.mxu0 0.0
        %785 = vmatpush1.msra.mxu0 0.0
        %786 = vmatprep.mubr.f32.mxu0 0.0
        %787 = vmatmul.mubr.f32.gmra.mrb[0].mxu0 %v720
        %v788 = vpop.f32.mrb[0].mxu0
        %v789 = vadd.f32 %v718, %v788
        %v790 = vpop.f32.mrb[0].mxu0
        %v791 = vadd.f32 %v718, %v790
        %792 = vdwg.mxu0
        %v793 = vtanh.pop %v789
        %v794 = vtanh.pop %v791
        %v797 = vcombine.low %v793, %v794
        %v799 = vunpack.c.l.s4 1966171168
        %v800 = vunpack.c.0.s8 %v799
        %v801 = vlaneseq
        %v802 = vshrl.u32 %v801, 7
        %v803 = vsub.s32 %v800, %v802
        %v804 = vrot.slane %v797, %v803
        %v806 = vunpack.c.l.s4 1966171168
        %v807 = vunpack.c.0.s8 %v806
        %v808 = vlaneseq
        %v809 = vshrl.u32 %v808, 7
        %v810 = vsub.s32 %v807, %v809
        %v811 = vrot.slane %v804, %v810
        %v813 = vlaneseq
        %vm814 = vcmp.ge.s32.totalorder %v813, 0
        %vm815 = vcmp.lt.s32.totalorder %v813, 256
        %vm816 = vmand %vm814, %vm815
        %817 = vst.msk [vmem:[%s301] sm:$0x3] %vm816, %v811
        %s818 = sand.u32 %s205, 1
        %s819 = scalar_lea.sflag [#allocation4], %s818
        %s820 = sand.u32 %s205, 1
        %s821 = smul.addr %s820, 2
        %s822 = scalar_lea.vmem [#allocation3], %s821
        // Predicated region
        $region53: #{tpu_custom_call.1} parent=51 // pred_check
          %p823 = pneg %p215
        $region54: #{tpu_custom_call.1} parent=51 // pred_check_branch
          %825 = sbr.rel (%p823) target = $region56
        $region55: #{tpu_custom_call.1} parent=51 // pred_region
          %s826 = smul.u32 2, %s24
          %s828 = ssub.s32 32, 32
          %829 = vsyncadd %s819, %s828
          %s830 = smul.addr %s826, 16
          %s831 = scalar_lea.hbm %s8, %s830
          %s833 = sshll.u32 %s822, 4
          %s834 = int_to_ptr.vmem [resolvable:$true] %s833
          %836 = dma.vmem_to_hbm [thread:$0]  %s834, 32, %s831, %s819
        $region56: #{tpu_custom_call.1} parent=51 // pred_fallthru
          _
      $region52: #{tpu_custom_call.1} parent=5 // pred_fallthru
        _
      %p837 = scmp.le.s32.totalorder 2, %s19
      // Predicated region
      $region57: #{tpu_custom_call.1} parent=5 // pred_check
        %p838 = pneg %p837
      $region58: #{tpu_custom_call.1} parent=5 // pred_check_branch
        %840 = sbr.rel (%p838) target = $region60
      $region59: #{tpu_custom_call.1} parent=5 // pred_region
        %s841 = ssub.s32 %s19, 2
        // Predicated region
        $region61: #{tpu_custom_call.1} parent=59 // pred_check
          %p842 = pneg %p221
        $region62: #{tpu_custom_call.1} parent=59 // pred_check_branch
          %844 = sbr.rel (%p842) target = $region64
        $region63: #{tpu_custom_call.1} parent=59 // pred_region
          %s845 = sand.u32 %s206, 1
          %s846 = scalar_lea.sflag [#allocation4], %s845
          %s847 = sand.u32 %s206, 1
          %s848 = smul.addr %s847, 2
          %s849 = scalar_lea.vmem [#allocation3], %s848
          %850 = dma.done %s846, 32
        $region64: #{tpu_custom_call.1} parent=59 // pred_fallthru
          _
      $region60: #{tpu_custom_call.1} parent=5 // pred_fallthru
        _
    $region6: #{tpu_custom_call.1} parent=1 // loop_footer
      %s23 = sadd.s32 1, %s19
    $region7: #{tpu_custom_call.1} parent=1 // loop_footer_branch
      %18 = sbr.rel target = $region3
    $region8: #{tpu_custom_call.1} parent=1 // loop_exit
      _
    %851 = vsyncpa [#allocation4], 1
    %s852 = scalar_lea.sflag [#allocation4], 1
    %853 = vsyncpa %s852, 1

</llo_original>
